<compile_context>
chip_gen: v7x
topology: tpu7x:2x2x1
jax: 0.10.0
libtpu: 0.0.40
codegen_flags: <defaults>
</compile_context>

<pallas_src>
import functools

import jax
import jax.numpy as jnp
from jax.experimental import pallas as pl
from jax.experimental.pallas import tpu as pltpu


def _round_up(x, m):
    return ((x + m - 1) // m) * m


_SINGLE_TC_KINDS = ("v5e", "v5 lite", "v5lite", "v6e", "v6 lite", "v6lite")


def _default_num_splits():
    """2 splits on multi-TensorCore chips (v7x), 1 on single-TC chips (v5e/v6e)."""
    try:
        kind = jax.devices()[0].device_kind.lower()
    except Exception:
        return 1
    if any(s in kind for s in _SINGLE_TC_KINDS):
        return 1
    if "v7" in kind:
        return 2
    return 1


def _vmem_config():
    """(vmem_limit_bytes, tile_budget_bytes), generation-aware via physical VMEM size."""
    try:
        cap = int(pltpu.get_tpu_info().vmem_capacity_bytes)
    except Exception:
        cap = 0
    if cap >= (100 << 20):          # v5e / v6e: 128 MiB physical VMEM
        return 96 << 20, 48 << 20
    # v7x (64 MiB physical / TC) or unknown chip: stay conservative.
    return 32 << 20, 14 << 20


def _choose_tile_n(n_rows, num_classes, in_itemsize, *,
                   vmem_budget_bytes, max_tile=4096):
    """Largest multiple-of-8 row tile whose pipeline buffers + f32 temporaries fit."""
    # 2 pipeline buffers in the input dtype + ~5 full-width f32 temporaries live in-kernel
    # (shifted, e, iota, compare/select result, entropy product), + small per-row scalars.
    bytes_per_row = (2 * num_classes * int(in_itemsize)
                     + 5 * num_classes * 4
                     + 64)
    t = max(8, vmem_budget_bytes // bytes_per_row)
    t = min(t, max_tile, _round_up(n_rows, 8))
    return max(8, (int(t) // 8) * 8)


def _mlm_loss_kernel(logits_ref, target_ref, nll_ref, ent_ref,
                     *, n_valid, tile_n, compute_entropy):
    c = pl.program_id(0)            # parallel split (2-TC sharding on v7x)
    i = pl.program_id(1)            # sequential row-tile index within the split
    steps = pl.num_programs(1)

    @pl.when(i == 0)
    def _():
        nll_ref[...] = jnp.zeros_like(nll_ref)
        ent_ref[...] = jnp.zeros_like(ent_ref)

    x = logits_ref[...].astype(jnp.float32)                  # (tile_n, C)
    tgt = target_ref[...]                                     # (tile_n, 1) int32

    # Log-sum-exp form; only full-width transcendental is exp.
    m = jnp.max(x, axis=-1, keepdims=True)                    # (tile_n, 1)
    shifted = x - m                                           # x is dead after this
    e = jnp.exp(shifted)
    denom = jnp.sum(e, axis=-1, keepdims=True)                # (tile_n, 1)
    log_denom = jnp.log(denom)                                # narrow log, bound once

    # True-class shifted logit via compare+select (no float one-hot multiply).
    cols = jax.lax.broadcasted_iota(jnp.int32, shifted.shape, 1)
    shifted_true = jnp.sum(jnp.where(cols == tgt, shifted, 0.0),
                           axis=-1, keepdims=True)            # (tile_n, 1)

    # Ragged-tail / phantom-block masking by global row index.  jnp.where (not *mask)
    # because garbage edge rows can produce inf/NaN that a 0-multiply would not kill.
    row0 = (c * steps + i) * tile_n
    row_ids = jax.lax.broadcasted_iota(jnp.int32, (tile_n, 1), 0) + row0
    valid = row_ids < n_valid

    # nll_row = lse - logit_true = log(denom) - (logit_true - m) = log_denom - shifted_true
    nll_ref[...] += jnp.where(valid, log_denom - shifted_true, 0.0)

    if compute_entropy:
        # H = -sum p log p = log(denom) - sum(e * shifted) / denom   (divide is narrow)
        ent_rows = log_denom - jnp.sum(e * shifted, axis=-1, keepdims=True) / denom
        ent_ref[...] += jnp.where(valid, ent_rows, 0.0)


def mlm_loss(logits, target, scale_factor=1.0, entropy_reg=False,
             entropy_weight=0.1, *, tile_n=None, num_splits=None,
             vmem_limit_bytes=None):
    """Pallas implementation of MLMLoss.forward.

    logits: (B, S, C) float (f32 or bf16); target: (B, S) int class indices in [0, C).
    Returns a scalar float32 loss.
    """
    B, S, C = logits.shape
    N = B * S
    in_itemsize = jnp.dtype(logits.dtype).itemsize

    limit_default, tile_budget = _vmem_config()
    if vmem_limit_bytes is None:
        vmem_limit_bytes = limit_default
    if num_splits is None:
        num_splits = _default_num_splits()
    if tile_n is None:
        tile_n = _choose_tile_n(N, C, in_itemsize, vmem_budget_bytes=tile_budget)
    tile_n = max(8, (int(tile_n) // 8) * 8)

    n_blocks = pl.cdiv(N, tile_n)
    num_splits = max(1, min(int(num_splits), n_blocks))
    steps = pl.cdiv(n_blocks, num_splits)

    # Leading-dim merge is a free reshape (no HBM copy); no padding of logits at all.
    logits_flat = logits.reshape(N, C)
    target_flat = target.reshape(N, 1).astype(jnp.int32)

    kernel = functools.partial(
        _mlm_loss_kernel, n_valid=N, tile_n=tile_n,
        compute_entropy=bool(entropy_reg))

    def row_block(c, i):
        # Clamp phantom trailing blocks (their rows are masked to zero in-kernel).
        return (jnp.minimum(c * steps + i, n_blocks - 1), 0)

    cost = pl.CostEstimate(
        flops=int(6 * N * C),
        transcendentals=int(N * C + 2 * N),
        bytes_accessed=int(N * C * in_itemsize + N * 4
                           + 2 * num_splits * tile_n * 4),
    )

    nll_rows, ent_rows = pl.pallas_call(
        kernel,
        out_shape=(jax.ShapeDtypeStruct((num_splits * tile_n, 1), jnp.float32),
                   jax.ShapeDtypeStruct((num_splits * tile_n, 1), jnp.float32)),
        grid_spec=pltpu.PrefetchScalarGridSpec(
            num_scalar_prefetch=0,
            grid=(num_splits, steps),
            in_specs=[
                pl.BlockSpec((tile_n, C), row_block),
                pl.BlockSpec((tile_n, 1), row_block),
            ],
            out_specs=(
                pl.BlockSpec((tile_n, 1), lambda c, i: (c, 0)),  # resident per-split acc
                pl.BlockSpec((tile_n, 1), lambda c, i: (c, 0)),  # resident per-split acc
            ),
        ),
        compiler_params=pltpu.CompilerParams(
            dimension_semantics=("parallel", "arbitrary"),
            vmem_limit_bytes=int(vmem_limit_bytes)),
        cost_estimate=cost,
    )(logits_flat, target_flat)

    nll = (jnp.sum(nll_rows) / N) * scale_factor
    if entropy_reg:
        nll = nll + entropy_weight * (jnp.sum(ent_rows) / N)
    return nll


def _mlm_loss_ref(logits, target, scale_factor=1.0, entropy_reg=False,
                  entropy_weight=0.1):
    """Pure-JAX reference matching the PyTorch forward semantics."""
    B, S, C = logits.shape
    logits_flat = logits.reshape(-1, C).astype(jnp.float32)
    target_flat = target.reshape(-1).astype(jnp.int32)
    probs = jax.nn.softmax(logits_flat, axis=-1)
    true_probs = jnp.take_along_axis(probs, target_flat[:, None], axis=-1)[:, 0]
    nll = -jnp.log(true_probs).mean() * scale_factor
    if entropy_reg:
        entropy = (-jnp.sum(probs * jnp.log(probs + 1e-8), axis=-1)).mean()
        nll = nll + entropy_weight * entropy
    return nll


if __name__ == "__main__":
    key = jax.random.PRNGKey(0)
    k1, k2, k3, k4, k5, k6 = jax.random.split(key, 6)

    # Case 1 & 2: f32 logits, (batch, seq, classes) = (2, 8, 32).
    B, S, C = 2, 8, 32
    logits = jax.random.normal(k1, (B, S, C), dtype=jnp.float32)
    target = jax.random.randint(k2, (B, S), 0, C, dtype=jnp.int32)

    loss = jax.block_until_ready(mlm_loss(logits, target, scale_factor=1.0))
    ref = _mlm_loss_ref(logits, target, scale_factor=1.0)
    assert jnp.allclose(loss, ref, rtol=1e-5, atol=1e-5), (loss, ref)

    loss_er = jax.block_until_ready(
        mlm_loss(logits, target, scale_factor=0.5,
                 entropy_reg=True, entropy_weight=0.1))
    ref_er = _mlm_loss_ref(logits, target, scale_factor=0.5,
                           entropy_reg=True, entropy_weight=0.1)
    assert jnp.allclose(loss_er, ref_er, rtol=1e-5, atol=1e-5), (loss_er, ref_er)

    # Case 3: bf16 logits, non-divisible row count exercises the masked ragged tail
    # (no HBM-side padding anymore).
    B2, S2, C2 = 2, 7, 128
    logits_bf = jax.random.normal(k3, (B2, S2, C2),
                                  dtype=jnp.float32).astype(jnp.bfloat16)
    target2 = jax.random.randint(k4, (B2, S2), 0, C2, dtype=jnp.int32)
    loss_bf = jax.block_until_ready(
        mlm_loss(logits_bf, target2, scale_factor=1.0, entropy_reg=True))
    ref_bf = _mlm_loss_ref(logits_bf.astype(jnp.float32), target2,
                           scale_factor=1.0, entropy_reg=True)
    assert jnp.allclose(loss_bf, ref_bf, rtol=1e-4, atol=1e-4), (loss_bf, ref_bf)

    # Case 4: forced 2-way split with an odd block count -> exercises the clamped
    # phantom-block path and the multi-split accumulators on any chip.
    B3, S3, C3 = 3, 8, 32
    logits3 = jax.random.normal(k5, (B3, S3, C3), dtype=jnp.float32)
    target3 = jax.random.randint(k6, (B3, S3), 0, C3, dtype=jnp.int32)
    loss3 = jax.block_until_ready(
        mlm_loss(logits3, target3, scale_factor=1.3, entropy_reg=True,
                 tile_n=8, num_splits=2))
    ref3 = _mlm_loss_ref(logits3, target3, scale_factor=1.3, entropy_reg=True)
    assert jnp.allclose(loss3, ref3, rtol=1e-5, atol=1e-5), (loss3, ref3)

    print("KERNEL_OK")
</pallas_src>

<mosaic_0001>
module attributes {stable_mosaic.version = 11 : i64} {
  func.func @_mlm_loss_kernel(%arg0: i32, %arg1: i32, %arg2: memref<16x32xf32, #tpu.memory_space<vmem>>, %arg3: memref<16x1xi32, #tpu.memory_space<vmem>>, %arg4: memref<16x1xf32, #tpu.memory_space<vmem>>, %arg5: memref<16x1xf32, #tpu.memory_space<vmem>>) attributes {dimension_semantics = [#tpu.dimension_semantics<parallel>, #tpu.dimension_semantics<arbitrary>], iteration_bounds = array<i64: 1, 1>, scalar_prefetch = 0 : i64, scratch_operands = 0 : i64, tpu.core_type = #tpu.core_type<tc>, window_params = [{transform_indices = @transform_0, window_bounds = array<i64: 16, 32>}, {transform_indices = @transform_1, window_bounds = array<i64: 16, 1>}, {transform_indices = @transform_2, window_bounds = array<i64: 16, 1>}, {transform_indices = @transform_3, window_bounds = array<i64: 16, 1>}]} {
    %c0_i32 = arith.constant 0 : i32
    %0 = arith.cmpi eq, %arg1, %c0_i32 : i32
    %1 = arith.extui %0 : i1 to i32
    %c0_i32_0 = arith.constant 0 : i32
    %2 = arith.cmpi ne, %1, %c0_i32_0 : i32
    scf.if %2 {
      %cst_13 = arith.constant 0.000000e+00 : f32
      %34 = vector.broadcast %cst_13 : f32 to vector<16x1xf32>
      %c0_14 = arith.constant 0 : index
      %c0_15 = arith.constant 0 : index
      %35 = vector.load %arg4[%c0_14, %c0_15] : memref<16x1xf32, #tpu.memory_space<vmem>>, vector<16x1xf32>
      tpu.vector_store %arg4[%c0_14, %c0_15], %34 {strides = array<i32>} : memref<16x1xf32, #tpu.memory_space<vmem>>, vector<16x1xf32>,
      %cst_16 = arith.constant 0.000000e+00 : f32
      %36 = vector.broadcast %cst_16 : f32 to vector<16x1xf32>
      %c0_17 = arith.constant 0 : index
      %c0_18 = arith.constant 0 : index
      %37 = vector.load %arg5[%c0_17, %c0_18] : memref<16x1xf32, #tpu.memory_space<vmem>>, vector<16x1xf32>
      tpu.vector_store %arg5[%c0_17, %c0_18], %36 {strides = array<i32>} : memref<16x1xf32, #tpu.memory_space<vmem>>, vector<16x1xf32>,
    } else {
    }
    %c0 = arith.constant 0 : index
    %c0_1 = arith.constant 0 : index
    %3 = vector.load %arg2[%c0, %c0_1] : memref<16x32xf32, #tpu.memory_space<vmem>>, vector<16x32xf32>
    %c0_2 = arith.constant 0 : index
    %c0_3 = arith.constant 0 : index
    %4 = vector.load %arg3[%c0_2, %c0_3] : memref<16x1xi32, #tpu.memory_space<vmem>>, vector<16x1xi32>
    %cst = arith.constant dense<0xFF800000> : vector<16xf32>
    %5 = vector.multi_reduction <maximumf>, %3, %cst [1] : vector<16x32xf32> to vector<16xf32>
    %6 = vector.shape_cast %5 : vector<16xf32> to vector<16x1xf32>
    %7 = vector.broadcast %6 : vector<16x1xf32> to vector<16x32xf32>
    %8 = arith.subf %3, %7 : vector<16x32xf32>
    %9 = math.exp %8 : vector<16x32xf32>
    %cst_4 = arith.constant dense<0.000000e+00> : vector<16xf32>
    %10 = vector.multi_reduction <add>, %9, %cst_4 [1] : vector<16x32xf32> to vector<16xf32>
    %11 = vector.shape_cast %10 : vector<16xf32> to vector<16x1xf32>
    %12 = math.log %11 : vector<16x1xf32>
    %13 = tpu.iota {dimensions = array<i32: 1>} : vector<16x32xi32>
    %14 = vector.broadcast %4 : vector<16x1xi32> to vector<16x32xi32>
    %15 = arith.cmpi eq, %13, %14 : vector<16x32xi32>
    %cst_5 = arith.constant 0.000000e+00 : f32
    %16 = vector.broadcast %cst_5 : f32 to vector<16x32xf32>
    %17 = arith.select %15, %8, %16 : vector<16x32xi1>, vector<16x32xf32>
    %cst_6 = arith.constant dense<0.000000e+00> : vector<16xf32>
    %18 = vector.multi_reduction <add>, %17, %cst_6 [1] : vector<16x32xf32> to vector<16xf32>
    %19 = vector.shape_cast %18 : vector<16xf32> to vector<16x1xf32>
    %c1_i32 = arith.constant 1 : i32
    %20 = arith.muli %arg0, %c1_i32 : i32
    %21 = arith.addi %20, %arg1 : i32
    %c16_i32 = arith.constant 16 : i32
    %22 = arith.muli %21, %c16_i32 : i32
    %23 = tpu.iota {dimensions = array<i32: 0>} : vector<16x1xi32>
    %24 = vector.broadcast %22 : i32 to vector<16x1xi32>
    %25 = arith.addi %23, %24 : vector<16x1xi32>
    %c16_i32_7 = arith.constant 16 : i32
    %26 = vector.broadcast %c16_i32_7 : i32 to vector<16x1xi32>
    %27 = arith.cmpi slt, %25, %26 : vector<16x1xi32>
    %c0_8 = arith.constant 0 : index
    %c0_9 = arith.constant 0 : index
    %28 = vector.load %arg4[%c0_8, %c0_9] : memref<16x1xf32, #tpu.memory_space<vmem>>, vector<16x1xf32>
    %29 = arith.subf %12, %19 : vector<16x1xf32>
    %cst_10 = arith.constant 0.000000e+00 : f32
    %30 = vector.broadcast %cst_10 : f32 to vector<16x1xf32>
    %31 = arith.select %27, %29, %30 : vector<16x1xi1>, vector<16x1xf32>
    %32 = arith.addf %28, %31 : vector<16x1xf32>
    %c0_11 = arith.constant 0 : index
    %c0_12 = arith.constant 0 : index
    %33 = vector.load %arg4[%c0_11, %c0_12] : memref<16x1xf32, #tpu.memory_space<vmem>>, vector<16x1xf32>
    tpu.vector_store %arg4[%c0_11, %c0_12], %32 {strides = array<i32>} : memref<16x1xf32, #tpu.memory_space<vmem>>, vector<16x1xf32>,
    return
  }
  func.func @transform_0(%arg0: i32, %arg1: i32) -> (i32, i32) {
    %c1_i32 = arith.constant 1 : i32
    %0 = arith.muli %arg0, %c1_i32 : i32
    %1 = arith.addi %0, %arg1 : i32
    %c0_i32 = arith.constant 0 : i32
    %2 = arith.minsi %1, %c0_i32 : i32
    %c0_i32_0 = arith.constant 0 : i32
    %c0_i32_1 = arith.constant 0 : i32
    return %2, %c0_i32_0 : i32, i32
  }
  func.func @transform_1(%arg0: i32, %arg1: i32) -> (i32, i32) {
    %c1_i32 = arith.constant 1 : i32
    %0 = arith.muli %arg0, %c1_i32 : i32
    %1 = arith.addi %0, %arg1 : i32
    %c0_i32 = arith.constant 0 : i32
    %2 = arith.minsi %1, %c0_i32 : i32
    %c0_i32_0 = arith.constant 0 : i32
    %c0_i32_1 = arith.constant 0 : i32
    return %2, %c0_i32_0 : i32, i32
  }
  func.func @transform_2(%arg0: i32, %arg1: i32) -> (i32, i32) {
    %c0_i32 = arith.constant 0 : i32
    %c0_i32_0 = arith.constant 0 : i32
    return %arg0, %c0_i32 : i32, i32
  }
  func.func @transform_3(%arg0: i32, %arg1: i32) -> (i32, i32) {
    %c0_i32 = arith.constant 0 : i32
    %c0_i32_0 = arith.constant 0 : i32
    return %arg0, %c0_i32 : i32, i32
  }
}

</mosaic_0001>

<llo_original>
// kernel: tpu_custom_call.1
$region0: #{tpu_custom_call.1}
  #allocation0 [shape = 'u32[]', space=smem, size = 0x4, offset = 0x4, fixed_abs, tag = 'smem constant byte address 0x4 - core index']
  #allocation1 [shape = 'u32[144,128]{1,0:T(1,128)}', space=vmem, size = 0x12000, scoped, tag = 'internal scratch']
  %s0 = inlined_call_operand.vmem [shape: f32[16,32], index: 0, kind: input, shape index: {}]
  %s1 = inlined_call_operand.vmem [shape: s32[16,1], index: 1, kind: input, shape index: {}]
  %s2 = inlined_call_operand.vmem [shape: f32[16,1], index: 2, kind: output, shape index: {0}]
  %s3 = inlined_call_operand.vmem [shape: f32[16,1], index: 3, kind: output, shape index: {1}]
  %4 = xla_tuple %s2, %s3
  %s5 = sld [smem:[#allocation0]]
  $region30: #{tpu_custom_call.1} parent=0
    _
  %s7 = ssub.s32 1, %s5
  %s8 = scalar_select 0, %s7, %s5
  // Predicated region
  $region2: #{tpu_custom_call.1} parent=0 // pred_check
    _
  $region3: #{tpu_custom_call.1} parent=0 // pred_check_branch
    %10 = sbr.rel (0) target = $region5
  $region4: #{tpu_custom_call.1} parent=0 // pred_region
    %s11 = sadd.s32 0, 0
    %p12 = scmp.lt.s32.totalorder %s11, 0
    %s13 = scalar_select %p12, %s11, 0
    %s14 = smul.u32 2, %s13
    %p15 = scmp.lt.s32.totalorder %s14, 1
    %s16 = scalar_select %p15, %s14, 1
    %s17 = smul.addr %s16, 8
    %s18 = scalar_lea.vmem %s0, %s17
    %s19 = sadd.s32 0, 0
    %p20 = scmp.lt.s32.totalorder %s19, 0
    %s21 = scalar_select %p20, %s19, 0
    %s22 = smul.u32 2, %s21
  $region5: #{tpu_custom_call.1} parent=0 // pred_fallthru
    _
  // Predicated region
  $region6: #{tpu_custom_call.1} parent=0 // pred_check
    _
  $region7: #{tpu_custom_call.1} parent=0 // pred_check_branch
    %24 = sbr.rel (0) target = $region9
  $region8: #{tpu_custom_call.1} parent=0 // pred_region
    %s25 = sadd.s32 0, 0
    %p26 = scmp.lt.s32.totalorder %s25, 0
    %s27 = scalar_select %p26, %s25, 0
    %s28 = smul.u32 2, %s27
    %p29 = scmp.lt.s32.totalorder %s28, 1
    %s30 = scalar_select %p29, %s28, 1
    %s31 = smul.addr %s30, 8
    %s32 = scalar_lea.vmem %s1, %s31
    %s33 = sadd.s32 0, 0
    %p34 = scmp.lt.s32.totalorder %s33, 0
    %s35 = scalar_select %p34, %s33, 0
    %s36 = smul.u32 2, %s35
  $region9: #{tpu_custom_call.1} parent=0 // pred_fallthru
    _
  %s37 = sadd.s32 0, 0
  %p38 = scmp.lt.s32.totalorder %s37, 0
  %s39 = scalar_select %p38, %s37, 0
  %s40 = smul.u32 2, %s39
  %p41 = scmp.lt.s32.totalorder %s40, 1
  %s42 = scalar_select %p41, %s40, 1
  %s43 = smul.addr %s42, 8
  %s44 = scalar_lea.vmem %s0, %s43
  %s45 = sadd.s32 0, 0
  %p46 = scmp.lt.s32.totalorder %s45, 0
  %s47 = scalar_select %p46, %s45, 0
  %s48 = smul.u32 2, %s47
  %p49 = scmp.lt.s32.totalorder %s48, 1
  %s50 = scalar_select %p49, %s48, 1
  %s51 = smul.addr %s50, 8
  %s52 = scalar_lea.vmem %s1, %s51
  %s53 = sadd.s32 0, 0
  %p54 = scmp.lt.s32.totalorder %s53, 0
  %s55 = scalar_select %p54, %s53, 0
  %s56 = smul.u32 2, %s55
  %p57 = scmp.lt.s32.totalorder %s56, 1
  %s58 = scalar_select %p57, %s56, 1
  %s59 = smul.addr %s58, 8
  %s60 = scalar_lea.vmem %s0, %s59
  %s61 = sadd.s32 0, 0
  %p62 = scmp.lt.s32.totalorder %s61, 0
  %s63 = scalar_select %p62, %s61, 0
  %s64 = smul.u32 2, %s63
  %s65 = sadd.s32 0, 0
  %p66 = scmp.lt.s32.totalorder %s65, 0
  %s67 = scalar_select %p66, %s65, 0
  %s68 = smul.u32 2, %s67
  %p69 = scmp.lt.s32.totalorder %s68, 1
  %s70 = scalar_select %p69, %s68, 1
  %s71 = smul.addr %s70, 8
  %s72 = scalar_lea.vmem %s1, %s71
  %s73 = sadd.s32 0, 0
  %p74 = scmp.lt.s32.totalorder %s73, 0
  %s75 = scalar_select %p74, %s73, 0
  %s76 = smul.u32 2, %s75
  %p77 = scmp.eq.s32.totalorder 0, 0
  // Predicated region
  $region10: #{tpu_custom_call.1} parent=0 // pred_check
    %p78 = pneg %p77
  $region11: #{tpu_custom_call.1} parent=0 // pred_check_branch
    %80 = sbr.rel (%p78) target = $region13
  $region12: #{tpu_custom_call.1} parent=0 // pred_region
    %vm81 = vcmask 7168
    %82 = vst.msk [vmem:[%s2] sm:$0xff] %vm81, 0.0
    %83 = vst.msk [vmem:[%s2 + $0x8] sm:$0xff] %vm81, 0.0
    %84 = vst.msk [vmem:[%s3] sm:$0xff] %vm81, 0.0
    %85 = vst.msk [vmem:[%s3 + $0x8] sm:$0xff] %vm81, 0.0
  $region13: #{tpu_custom_call.1} parent=0 // pred_fallthru
    _
  %v86 = vld [vmem:[%s60] sm:$0xff]
  %v87 = vld [vmem:[%s60 + $0x8] sm:$0xff]
  %v88 = vld [vmem:[%s72] sm:$0xff]
  %v89 = vld [vmem:[%s72 + $0x8] sm:$0xff]
  %vm90 = vcmask 261120
  %v91 = vsel %vm90, %v86, -inf
  %92 = vmax.xlane.f32.xlu0 %v91
  %v93 = vpop.xlane.xlu0 %92
  %v94 = vsel %vm90, %v87, -inf
  %95 = vmax.xlane.f32.xlu0 %v94
  %v96 = vpop.xlane.xlu0 %95
  %v97 = vsub.f32 %v86, %v93
  %v98 = vsub.f32 %v87, %v96
  %v99 = vmul.f32 %v97, 1.442695
  %v100 = vpow.pop %v99
  %v101 = vmul.f32 %v98, 1.442695
  %v102 = vpow.pop %v101
  %v103 = vsel %vm90, %v100, 0.0
  %104 = vadd.xlane.f32.xlu0 %v103
  %v105 = vpop.xlane.xlu0 %104
  %v106 = vsel %vm90, %v102, 0.0
  %107 = vadd.xlane.f32.xlu0 %v106
  %v108 = vpop.xlane.xlu0 %107
  %v109 = vlog2.pop %v105
  %v110 = vmul.f32 %v109, 0.6931472
  %v111 = vlog2.pop %v108
  %v112 = vmul.f32 %v111, 0.6931472
  %v113 = vlaneseq
  %v114 = vand.u32 %v113, 127
  %115 = vset.pattern.permute.xlu0 0
  %116 = vperm.xlu0 %115, %v88
  %v117 = vpop.permute.xlu0 %116
  %118 = vset.pattern.permute.xlu0 0
  %119 = vperm.xlu0 %118, %v89
  %v120 = vpop.permute.xlu0 %119
  %vm121 = vcmp.eq.s32.totalorder %v114, %v117
  %vm122 = vcmp.eq.s32.totalorder %v114, %v120
  %v123 = vsel %vm121, %v97, 0.0
  %v124 = vsel %vm122, %v98, 0.0
  %v125 = vsel %vm90, %v123, 0.0
  %126 = vadd.xlane.f32.xlu0 %v125
  %v127 = vpop.xlane.xlu0 %126
  %v128 = vsel %vm90, %v124, 0.0
  %129 = vadd.xlane.f32.xlu0 %v128
  %v130 = vpop.xlane.xlu0 %129
  %s131 = sadd.s32 0, 0
  %s132 = smul.u32 %s131, 16
  %v133 = vlaneseq
  %v134 = vshrl.u32 %v133, 7
  %v135 = vadd.s32 %v134, 8
  %v136 = vstv %s132
  %v137 = vadd.s32 %v134, %v136
  %v138 = vadd.s32 %v135, %v136
  %vm139 = vcmp.lt.s32.totalorder %v137, 16
  %vm140 = vcmp.lt.s32.totalorder %v138, 16
  %v141 = vld [vmem:[%s2] sm:$0xff]
  %v142 = vld [vmem:[%s2 + $0x8] sm:$0xff]
  %v143 = vsub.f32 %v110, %v127
  %v144 = vsub.f32 %v112, %v130
  %v145 = vsel %vm139, %v143, 0.0
  %v146 = vsel %vm140, %v144, 0.0
  %v147 = vadd.f32 %v141, %v145
  %v148 = vadd.f32 %v142, %v146
  %vm149 = vcmask 7168
  %150 = vst.msk [vmem:[%s2] sm:$0xff] %vm149, %v147
  %151 = vst.msk [vmem:[%s2 + $0x8] sm:$0xff] %vm149, %v148
  // Predicated region
  $region14: #{tpu_custom_call.1} parent=0 // pred_check
    _
  $region15: #{tpu_custom_call.1} parent=0 // pred_check_branch
    %153 = sbr.rel (0) target = $region17
  $region16: #{tpu_custom_call.1} parent=0 // pred_region
    _
  $region17: #{tpu_custom_call.1} parent=0 // pred_fallthru
    _
  // Predicated region
  $region18: #{tpu_custom_call.1} parent=0 // pred_check
    _
  $region19: #{tpu_custom_call.1} parent=0 // pred_check_branch
    %155 = sbr.rel (0) target = $region21
  $region20: #{tpu_custom_call.1} parent=0 // pred_region
    _
  $region21: #{tpu_custom_call.1} parent=0 // pred_fallthru
    _
  // Predicated region
  $region22: #{tpu_custom_call.1} parent=0 // pred_check
    _
  $region23: #{tpu_custom_call.1} parent=0 // pred_check_branch
    %157 = sbr.rel (0) target = $region25
  $region24: #{tpu_custom_call.1} parent=0 // pred_region
    _
  $region25: #{tpu_custom_call.1} parent=0 // pred_fallthru
    _
  // Predicated region
  $region26: #{tpu_custom_call.1} parent=0 // pred_check
    _
  $region27: #{tpu_custom_call.1} parent=0 // pred_check_branch
    %159 = sbr.rel (0) target = $region29
  $region28: #{tpu_custom_call.1} parent=0 // pred_region
    _
  $region29: #{tpu_custom_call.1} parent=0 // pred_fallthru
    _

</llo_original>
